<compile_context>
chip_gen: v6e
topology: v6e:2x2x1
jax: 0.10.0
libtpu: 0.0.40
codegen_flags: <defaults>
</compile_context>

<pallas_src>
import functools
import math

import jax
import jax.numpy as jnp
from jax.experimental import pallas as pl
from jax.experimental.pallas import tpu as pltpu


def _layernorm_kernel(x_ref, gb_ref, o_ref, *, eps):
    # Keep the VMEM tile in the input dtype; compute in f32 registers.
    x = x_ref[...].astype(jnp.float32)                        # (tr, F)
    features = x.shape[-1]
    mean = jnp.sum(x, axis=-1, keepdims=True) * (1.0 / features)
    diff = x - mean
    # torch.std is unbiased: divides by (N - 1).
    denom = max(features - 1, 1)
    var = jnp.sum(diff * diff, axis=-1, keepdims=True) * (1.0 / denom)
    std = jnp.sqrt(var)
    # Per-row EXACT reciprocal: (tr, 1) shaped, so exactness is essentially
    # free, and it matches the PyTorch reference's exact divide.
    inv = pl.reciprocal(std + eps, approx=False)              # (tr, 1)
    gamma = gb_ref[0:1, :]                                    # (1, F), f32
    beta = gb_ref[1:2, :]
    # NOTE: masked tail rows (rows % tr != 0) read implementation-defined
    # padding and may produce inf/NaN in std/inv; those rows are discarded on
    # write-back and nothing here reduces across rows, so this is benign.
    o_ref[...] = ((diff * inv) * gamma + beta).astype(o_ref.dtype)


def _tpu_params():
    """Returns (vmem_capacity_bytes, num_tensorcores, is_v7x)."""
    vmem = None
    cores = None
    try:
        info = pltpu.get_tpu_info()
        cap = getattr(info, "vmem_capacity_bytes", None)
        if cap:
            vmem = int(cap)
        for attr in ("num_cores", "num_tensorcores", "tensorcore_count",
                     "core_count"):
            v = getattr(info, attr, None)
            if v:
                cores = int(v)
                break
    except Exception:
        pass
    kind = ""
    try:
        kind = jax.devices()[0].device_kind.lower()
    except Exception:
        pass
    is_v7 = "v7" in kind
    if vmem is None:
        # Chip-aware fallback: v5e/v6e have 128 MiB VMEM/core, v7x has 64 MiB.
        vmem = (64 if is_v7 else 128) * 1024 * 1024
    if cores is None:
        cores = 2 if is_v7 else 1
    return int(vmem), int(cores), is_v7


def _choose_tile_rows(rows, features, itemsize, vmem_limit, num_cores,
                      n_in_bufs, tile_rows):
    if rows <= 8:
        return rows  # single full-extent block (block == array dim is legal)
    if tile_rows is not None:
        tr = int(tile_rows)
    else:
        # Live bytes per tile row:
        #   x tile (n_in_bufs buffers, input dtype) + out tile (2 buffers,
        #   output dtype) + ~3 f32-wide in-kernel temporaries (x.astype(f32),
        #   diff, and the pre-store product) that can't all live in 64 vregs.
        per_row = features * (n_in_bufs * itemsize + 2 * itemsize + 3 * 4)
        budget = (vmem_limit * 3) // 4            # leave pipeline headroom
        tr_budget = budget // max(per_row, 1)
        # Target ~8 MiB for the x input tile itself so the ~0.35 us per-grid-
        # step overhead is well amortized (measured roofline plateau >=4 MiB).
        tr_target = (8 * 1024 * 1024) // max(features * itemsize, 1)
        tr = min(int(tr_budget), int(tr_target))
        if num_cores >= 2:
            # Only on multi-TC chips (v7x): keep >= num_cores grid steps so
            # the "parallel" row axis can shard across TensorCores.
            tr = min(tr, pl.cdiv(rows, num_cores))
    tr = max(8, min(tr, rows))
    if tr < rows:
        tr = (tr // 8) * 8  # sublane-aligned partial blocks
    return tr


def layernorm(x, a_2, b_2, eps=1e-6, *, tile_rows=None):
    """x: (..., features); a_2, b_2: (features,)."""
    features = x.shape[-1]
    lead_shape = x.shape[:-1]
    rows = math.prod(lead_shape) if lead_shape else 1

    # No wrapper-side padding: if features % 128 != 0 we use a full-extent
    # feature block (legal since the block dim equals the full array dim);
    # the final partial lane group is handled by masked stores in-kernel,
    # which is far cheaper than extra HBM pad/slice passes.
    x2d = x.reshape(rows, features)
    gb = jnp.stack([a_2, b_2]).astype(jnp.float32)            # (2, F) resident

    itemsize = jnp.dtype(x.dtype).itemsize
    vmem_cap, num_cores, is_v7 = _tpu_params()
    vmem_limit = min(vmem_cap * 3 // 4, 96 * 1024 * 1024)
    n_in_bufs = 3 if is_v7 else 2
    tr = _choose_tile_rows(rows, features, itemsize, vmem_limit, num_cores,
                           n_in_bufs, tile_rows)
    grid = pl.cdiv(rows, tr)  # tail block is masked; no tile-shrink loop

    # Triple-buffer the input only on v7x (very short DMAs at 3.2 TB/s) and
    # only when there are enough grid steps for it to matter.
    x_spec_kwargs = {}
    if is_v7 and grid >= 3:
        x_spec_kwargs = dict(pipeline_mode=pl.Buffered(3))
    x_spec = pl.BlockSpec((tr, features), lambda i: (i, 0), **x_spec_kwargs)

    kernel = functools.partial(_layernorm_kernel, eps=eps)

    out2d = pl.pallas_call(
        kernel,
        out_shape=jax.ShapeDtypeStruct((rows, features), x.dtype),
        grid_spec=pltpu.PrefetchScalarGridSpec(
            num_scalar_prefetch=0,
            grid=(grid,),
            in_specs=[
                x_spec,
                pl.BlockSpec((2, features), lambda i: (0, 0)),
            ],
            out_specs=pl.BlockSpec((tr, features), lambda i: (i, 0)),
        ),
        compiler_params=pltpu.CompilerParams(
            dimension_semantics=("parallel",),
            vmem_limit_bytes=vmem_limit,
        ),
    )(x2d, gb)

    return out2d.reshape(*lead_shape, features)


def layernorm_ref(x, a_2, b_2, eps=1e-6):
    """Pure-JAX reference mirroring the PyTorch module."""
    mean = jnp.mean(x, axis=-1, keepdims=True)
    n = x.shape[-1]
    var = jnp.sum((x - mean) ** 2, axis=-1, keepdims=True) / max(n - 1, 1)
    std = jnp.sqrt(var)
    return a_2 * (x - mean) / (std + eps) + b_2


if __name__ == "__main__":
    key = jax.random.PRNGKey(0)
    k1, k2, k3, k4 = jax.random.split(key, 4)

    # Case 1: module-default params (ones/zeros), tiny hidden=32.  Exercises a
    # non-128-multiple feature dim via a full-extent feature block.
    batch, seq, hidden = 2, 8, 32
    x = jax.random.normal(k1, (batch, seq, hidden), dtype=jnp.float32)
    a_2 = jnp.ones((hidden,), dtype=jnp.float32)
    b_2 = jnp.zeros((hidden,), dtype=jnp.float32)
    out = jax.block_until_ready(layernorm(x, a_2, b_2))
    ref = layernorm_ref(x, a_2, b_2)
    assert out.shape == x.shape
    assert jnp.allclose(out, ref, atol=5e-3, rtol=5e-3), float(
        jnp.max(jnp.abs(out - ref)))

    # Case 2: lane-aligned features, odd row count and non-trivial affine
    # params (this is the case the approx reciprocal previously failed).
    x2 = jax.random.normal(k2, (3, 7, 256), dtype=jnp.float32)
    g2 = jax.random.normal(k3, (256,), dtype=jnp.float32)
    bb2 = jax.random.normal(k4, (256,), dtype=jnp.float32)
    out2 = jax.block_until_ready(layernorm(x2, g2, bb2))
    ref2 = layernorm_ref(x2, g2, bb2)
    assert out2.shape == x2.shape
    assert jnp.allclose(out2, ref2, atol=5e-3, rtol=5e-3), float(
        jnp.max(jnp.abs(out2 - ref2)))

    # Case 3: explicit small tile_rows to exercise a multi-step grid with a
    # masked tail block on the row axis.
    out3 = jax.block_until_ready(layernorm(x2, g2, bb2, tile_rows=8))
    assert jnp.allclose(out3, ref2, atol=5e-3, rtol=5e-3), float(
        jnp.max(jnp.abs(out3 - ref2)))

    print("KERNEL_OK")
</pallas_src>

<mosaic_0001>
module attributes {stable_mosaic.version = 11 : i64} {
  func.func @_layernorm_kernel(%arg0: i32, %arg1: memref<16x32xf32, #tpu.memory_space<vmem>>, %arg2: memref<2x32xf32, #tpu.memory_space<vmem>>, %arg3: memref<16x32xf32, #tpu.memory_space<vmem>>) attributes {dimension_semantics = [#tpu.dimension_semantics<parallel>], iteration_bounds = array<i64: 1>, scalar_prefetch = 0 : i64, scratch_operands = 0 : i64, tpu.core_type = #tpu.core_type<tc>, window_params = [{transform_indices = @transform_0, window_bounds = array<i64: 16, 32>}, {pipeline_mode = #tpu.pipeline_mode<synchronous>, transform_indices = @transform_1, window_bounds = array<i64: 2, 32>}, {transform_indices = @transform_2, window_bounds = array<i64: 16, 32>}]} {
    %c0 = arith.constant 0 : index
    %c0_0 = arith.constant 0 : index
    %0 = vector.load %arg1[%c0, %c0_0] : memref<16x32xf32, #tpu.memory_space<vmem>>, vector<16x32xf32>
    %cst = arith.constant dense<0.000000e+00> : vector<16xf32>
    %1 = vector.multi_reduction <add>, %0, %cst [1] : vector<16x32xf32> to vector<16xf32>
    %2 = vector.shape_cast %1 : vector<16xf32> to vector<16x1xf32>
    %cst_1 = arith.constant 3.125000e-02 : f32
    %3 = vector.broadcast %cst_1 : f32 to vector<16x1xf32>
    %4 = arith.mulf %2, %3 : vector<16x1xf32>
    %5 = vector.broadcast %4 : vector<16x1xf32> to vector<16x32xf32>
    %6 = arith.subf %0, %5 : vector<16x32xf32>
    %7 = arith.mulf %6, %6 : vector<16x32xf32>
    %cst_2 = arith.constant dense<0.000000e+00> : vector<16xf32>
    %8 = vector.multi_reduction <add>, %7, %cst_2 [1] : vector<16x32xf32> to vector<16xf32>
    %9 = vector.shape_cast %8 : vector<16xf32> to vector<16x1xf32>
    %cst_3 = arith.constant 0.0322580636 : f32
    %10 = vector.broadcast %cst_3 : f32 to vector<16x1xf32>
    %11 = arith.mulf %9, %10 : vector<16x1xf32>
    %12 = math.sqrt %11 : vector<16x1xf32>
    %cst_4 = arith.constant 9.99999997E-7 : f32
    %13 = vector.broadcast %cst_4 : f32 to vector<16x1xf32>
    %14 = arith.addf %12, %13 : vector<16x1xf32>
    %15 = tpu.reciprocal %14 : vector<16x1xf32> -> vector<16x1xf32>
    %c0_5 = arith.constant 0 : index
    %c0_6 = arith.constant 0 : index
    %16 = vector.load %arg2[%c0_5, %c0_6] : memref<2x32xf32, #tpu.memory_space<vmem>>, vector<1x32xf32>
    %c1 = arith.constant 1 : index
    %c0_7 = arith.constant 0 : index
    %17 = vector.load %arg2[%c1, %c0_7] : memref<2x32xf32, #tpu.memory_space<vmem>>, vector<1x32xf32>
    %18 = vector.broadcast %15 : vector<16x1xf32> to vector<16x32xf32>
    %19 = arith.mulf %6, %18 : vector<16x32xf32>
    %20 = vector.broadcast %16 : vector<1x32xf32> to vector<16x32xf32>
    %21 = arith.mulf %19, %20 : vector<16x32xf32>
    %22 = vector.broadcast %17 : vector<1x32xf32> to vector<16x32xf32>
    %23 = arith.addf %21, %22 : vector<16x32xf32>
    %c0_8 = arith.constant 0 : index
    %c0_9 = arith.constant 0 : index
    %24 = vector.load %arg3[%c0_8, %c0_9] : memref<16x32xf32, #tpu.memory_space<vmem>>, vector<16x32xf32>
    tpu.vector_store %arg3[%c0_8, %c0_9], %23 {strides = array<i32>} : memref<16x32xf32, #tpu.memory_space<vmem>>, vector<16x32xf32>,
    return
  }
  func.func @transform_0(%arg0: i32) -> (i32, i32) {
    %c0_i32 = arith.constant 0 : i32
    %c0_i32_0 = arith.constant 0 : i32
    return %arg0, %c0_i32 : i32, i32
  }
  func.func @transform_1(%arg0: i32) -> (i32, i32) {
    %c0_i32 = arith.constant 0 : i32
    %c0_i32_0 = arith.constant 0 : i32
    %c0_i32_1 = arith.constant 0 : i32
    return %c0_i32, %c0_i32_0 : i32, i32
  }
  func.func @transform_2(%arg0: i32) -> (i32, i32) {
    %c0_i32 = arith.constant 0 : i32
    %c0_i32_0 = arith.constant 0 : i32
    return %arg0, %c0_i32 : i32, i32
  }
}

</mosaic_0001>

<llo_original>
// kernel: tpu_custom_call.1
$region0: #{tpu_custom_call.1}
  #allocation0 [shape = 'u32[]', space=smem, size = 0x4, offset = 0x4, fixed_abs, tag = 'smem constant byte address 0x4 - core index']
  #allocation1 [shape = 'u32[144,128]{1,0:T(1,128)}', space=vmem, size = 0x12000, scoped, tag = 'internal scratch']
  %s0 = inlined_call_operand.hbm [shape: f32[16,32], index: 0, kind: input, shape index: {}]
  %s1 = inlined_call_operand.hbm [shape: f32[2,32], index: 1, kind: input, shape index: {}]
  %s2 = inlined_call_operand.hbm [shape: f32[16,32], index: 2, kind: output, shape index: {}]
  %s3 = sld [smem:[#allocation0]]
  $region26: #{tpu_custom_call.1} parent=0
    _
  %s5 = ssub.s32 1, %s3
  %s6 = scalar_select 0, %s5, %s3
  $region1: #{tpu_custom_call.1} parent=0
    #allocation2 [shape = 'u8[8192]{0}', space=vmem, size = 0x2000, scoped, tag = 'input window, operand 0, single buffered']
    #allocation3 [shape = 's32[1]{0}', space=sflag, size = 0x4, scoped, tag = 'scoped memory for tpu_custom_call.1']
    #allocation4 [shape = 's32[1]{0}', space=sflag, size = 0x4, scoped, tag = 'scoped memory for tpu_custom_call.1']
    #allocation5 [shape = 'u8[1024]{0}', space=vmem, size = 0x400, scoped, tag = 'input window, operand 1, single buffered']
    #allocation6 [shape = 's32[1]{0}', space=sflag, size = 0x4, scoped, tag = 'scoped memory for tpu_custom_call.1']
    #allocation7 [shape = 'u8[8192]{0}', space=vmem, size = 0x2000, scoped, tag = 'output window, operand 0, single buffered']
    %7 = vsyncpa [#allocation3], 0
    %8 = vsyncpa [#allocation6], 0
    %9 = vsyncpa [#allocation4], 0
    // Predicated region
    $region2: #{tpu_custom_call.1} parent=1 // pred_check
      _
    $region3: #{tpu_custom_call.1} parent=1 // pred_check_branch
      %11 = sbr.rel (0) target = $region5
    $region4: #{tpu_custom_call.1} parent=1 // pred_region
      %s13 = ssub.s32 256, 256
      %14 = vsyncadd [#allocation3], %s13
      %s15 = sshll.u32 [#allocation2], 4
      %s16 = int_to_ptr.vmem [resolvable:$true] %s15
      %21 = dma.hbm_to_vmem [thread:$0]  %s0, 256, %s16, [#allocation3], 128, 128, 8
    $region5: #{tpu_custom_call.1} parent=1 // pred_fallthru
      _
    // Predicated region
    $region6: #{tpu_custom_call.1} parent=1 // pred_check
      _
    $region7: #{tpu_custom_call.1} parent=1 // pred_check_branch
      %23 = sbr.rel (0) target = $region9
    $region8: #{tpu_custom_call.1} parent=1 // pred_region
      %s25 = ssub.s32 32, 32
      %26 = vsyncadd [#allocation6], %s25
      %s28 = sshll.u32 [#allocation5], 4
      %s29 = int_to_ptr.vmem [resolvable:$true] %s28
      %31 = dma.hbm_to_vmem [thread:$0]  %s1, 32, %s29, [#allocation6]
    $region9: #{tpu_custom_call.1} parent=1 // pred_fallthru
      _
    // Predicated region
    $region10: #{tpu_custom_call.1} parent=1 // pred_check
      _
    $region11: #{tpu_custom_call.1} parent=1 // pred_check_branch
      %33 = sbr.rel (0) target = $region13
    $region12: #{tpu_custom_call.1} parent=1 // pred_region
      %34 = dma.done [#allocation3], 256
    $region13: #{tpu_custom_call.1} parent=1 // pred_fallthru
      _
    // Predicated region
    $region14: #{tpu_custom_call.1} parent=1 // pred_check
      _
    $region15: #{tpu_custom_call.1} parent=1 // pred_check_branch
      %36 = sbr.rel (0) target = $region17
    $region16: #{tpu_custom_call.1} parent=1 // pred_region
      %37 = dma.done [#allocation6], 32
    $region17: #{tpu_custom_call.1} parent=1 // pred_fallthru
      _
    %v38 = vld [vmem:[#allocation2] sm:$0xff]
    %v39 = vld [vmem:[#allocation2 + $0x8] sm:$0xff]
    %vm40 = vcmask 261120
    %v41 = vsel %vm40, %v38, 0.0
    %42 = vadd.xlane.f32.xlu0 %v41
    %v43 = vpop.xlane.xlu0 %42
    %v44 = vsel %vm40, %v39, 0.0
    %45 = vadd.xlane.f32.xlu0 %v44
    %v46 = vpop.xlane.xlu0 %45
    %v47 = vmul.f32 %v43, 0.03125
    %v48 = vmul.f32 %v46, 0.03125
    %v49 = vsub.f32 %v38, %v47
    %v50 = vsub.f32 %v39, %v48
    %v51 = vmul.f32 %v49, %v49
    %v52 = vmul.f32 %v50, %v50
    %v53 = vsel %vm40, %v51, 0.0
    %54 = vadd.xlane.f32.xlu0 %v53
    %v55 = vpop.xlane.xlu0 %54
    %v56 = vsel %vm40, %v52, 0.0
    %57 = vadd.xlane.f32.xlu0 %v56
    %v58 = vpop.xlane.xlu0 %57
    %v59 = vmul.f32 %v55, 0.032258064
    %v60 = vmul.f32 %v58, 0.032258064
    %v61 = vrsqrt.pop %v59
    %v62 = vmul.f32 %v59, %v61
    %vm63 = vcmp.eq.f32.partialorder %v59, inf
    %v64 = vsel %vm63, %v59, %v62
    %vm65 = vcmp.eq.f32.partialorder %v59, 0.0
    %v66 = vand.u32 %v59, 2147483648
    %v67 = vsel %vm65, %v66, %v64
    %v68 = vrsqrt.pop %v60
    %v69 = vmul.f32 %v60, %v68
    %vm70 = vcmp.eq.f32.partialorder %v60, inf
    %v71 = vsel %vm70, %v60, %v69
    %vm72 = vcmp.eq.f32.partialorder %v60, 0.0
    %v73 = vand.u32 %v60, 2147483648
    %v74 = vsel %vm72, %v73, %v71
    %v75 = vadd.f32 %v67, 1e-06
    %v76 = vadd.f32 %v74, 1e-06
    %v77 = vrcp.pop %v75
    %v78 = vrcp.pop %v76
    %v79 = vld [vmem:[#allocation5] sm:$0x1]
    %v80 = vld [vmem:[#allocation5 + $0x1] sm:$0x1]
    %v81 = vmul.f32 %v49, %v77
    %v82 = vmul.f32 %v50, %v78
    %v83 = vlaneseq
    %v84 = vshrl.u32 %v83, 7
    %v85 = vsub.s32 0, %v84
    %v86 = vrot.slane %v79, %v85
    %v87 = vmul.f32 %v81, %v86
    %v88 = vmul.f32 %v82, %v86
    %v89 = vlaneseq
    %v90 = vshrl.u32 %v89, 7
    %v91 = vsub.s32 0, %v90
    %v92 = vrot.slane %v80, %v91
    %v93 = vadd.f32 %v87, %v92
    %v94 = vadd.f32 %v88, %v92
    %95 = vst.msk [vmem:[#allocation7] sm:$0xff] %vm40, %v93
    %96 = vst.msk [vmem:[#allocation7 + $0x8] sm:$0xff] %vm40, %v94
    // Predicated region
    $region18: #{tpu_custom_call.1} parent=1 // pred_check
      _
    $region19: #{tpu_custom_call.1} parent=1 // pred_check_branch
      %98 = sbr.rel (0) target = $region21
    $region20: #{tpu_custom_call.1} parent=1 // pred_region
      %s100 = ssub.s32 256, 256
      %101 = vsyncadd [#allocation4], %s100
      %s102 = sshll.u32 [#allocation7], 4
      %s103 = int_to_ptr.vmem [resolvable:$true] %s102
      %108 = dma.vmem_to_hbm [thread:$0]  %s103, 256, %s2, [#allocation4], 128, 128, 8
    $region21: #{tpu_custom_call.1} parent=1 // pred_fallthru
      _
    // Predicated region
    $region22: #{tpu_custom_call.1} parent=1 // pred_check
      _
    $region23: #{tpu_custom_call.1} parent=1 // pred_check_branch
      %110 = sbr.rel (0) target = $region25
    $region24: #{tpu_custom_call.1} parent=1 // pred_region
      %111 = dma.done [#allocation4], 256
    $region25: #{tpu_custom_call.1} parent=1 // pred_fallthru
      _
    %112 = vsyncpa [#allocation3], 1
    %113 = vsyncpa [#allocation6], 1
    %114 = vsyncpa [#allocation4], 1

</llo_original>
